<compile_context>
chip_gen: v7x
topology: tpu7x:2x2x1
jax: 0.10.0
libtpu: 0.0.40
codegen_flags: <defaults>
</compile_context>

<pallas_src>
from functools import partial

import jax
import jax.numpy as jnp
from jax.experimental import pallas as pl
from jax.experimental.pallas import tpu as pltpu

LN_EPS = 1e-5  # PyTorch nn.LayerNorm default


def _patch_embed_kernel(x_ref, w_ref, params_ref, o_ref):
    # x_ref: (TILE_M, K8) bf16     w_ref: (K8, E) bf16
    # params_ref: (8, E) f32 -- row 0 = conv bias, row 1 = LN gamma, row 2 = LN beta
    # o_ref: (TILE_M, E) out_dtype
    bias = params_ref[0:1, :]
    gamma = params_ref[1:2, :]
    beta = params_ref[2:3, :]

    y = jnp.dot(x_ref[...], w_ref[...],
                preferred_element_type=jnp.float32) + bias          # (TILE_M, E) f32

    # Two-pass LayerNorm statistics (safer than E[y^2]-E[y]^2 against
    # catastrophic cancellation; the extra sweep is hidden under HBM DMA).
    mean = jnp.mean(y, axis=-1, keepdims=True)
    yc = y - mean
    var = jnp.mean(yc * yc, axis=-1, keepdims=True)
    y_hat = yc * jax.lax.rsqrt(var + LN_EPS)                        # rsqrt -> EUP slot
    o_ref[...] = (y_hat * gamma + beta).astype(o_ref.dtype)


def _vmem_budget_bytes():
    """Generation-aware scoped-VMEM limit (v7x: 64 MiB physical; v5e/v6e: 128 MiB)."""
    try:
        kind = jax.devices()[0].device_kind.lower()
    except Exception:
        kind = ""
    if "v7" in kind:
        return 48 * 1024 * 1024
    if "v5" in kind or "v6" in kind:
        return 96 * 1024 * 1024
    return 32 * 1024 * 1024  # conservative fallback for unknown generations


def _choose_tile_m(M, K8, E, out_itemsize, vmem_budget):
    """Largest M-tile (multiple of 8, <=1024) whose double-buffered x/out tiles fit
    within ~half the VMEM budget, keeping the grid >= 2 so both v7x TCs get work."""
    per_row = 2 * (2 * K8) + 2 * out_itemsize * E          # dbl-buffered bf16 x + out
    resident = 2 * (2 * K8 * E) + 2 * (4 * 8 * E)          # weight + packed params
    avail = max(vmem_budget // 2 - resident, per_row * 8)
    cap = max(8, min(1024, (avail // per_row) // 8 * 8))
    tile = min(cap, max(8, pl.cdiv(M, 8) * 8))             # never bigger than M (rounded)
    if M > 8 and pl.cdiv(M, tile) < 2:                     # keep at least 2 grid steps
        tile = max(8, (pl.cdiv(M, 2) // 8) * 8)
    return int(tile)


@partial(jax.jit,
         static_argnames=("patch_size", "tile_m", "out_dtype", "vmem_limit_bytes"))
def _patch_embedding_impl(x, conv_w, conv_b, ln_gamma, ln_beta, *,
                          patch_size, tile_m, out_dtype, vmem_limit_bytes):
    B, C, H, W = x.shape
    p = patch_size
    nH, nW = H // p, W // p
    N = nH * nW
    E = conv_w.shape[0]
    K = C * p * p
    K8 = 8 * pl.cdiv(K, 8)      # sublane-align the contraction dim only (no pad to 128)
    M = B * N

    # Patch extraction (fused XLA glue inside this jit): (M, K) with per-patch
    # flattening order (c, kh, kw) matching the Conv2d weight layout, then bf16.
    # TODO(synk): in-kernel NCHW patch gather would avoid this HBM materialization.
    patches = (
        x.reshape(B, C, nH, p, nW, p)
         .transpose(0, 2, 4, 1, 3, 5)       # (B, nH, nW, C, p, p)
         .reshape(M, K)
    )
    if K8 != K:
        patches = jnp.pad(patches, ((0, 0), (0, K8 - K)))
    patches = patches.astype(jnp.bfloat16)

    w_proj = conv_w.reshape(E, K).T
    if K8 != K:
        w_proj = jnp.pad(w_proj, ((0, K8 - K), (0, 0)))
    w_proj = w_proj.astype(jnp.bfloat16)

    # Pack bias / gamma / beta into one (8, E) operand: one DMA + one VMEM buffer
    # instead of three sub-512B transfers and three double-buffered allocations.
    params = (jnp.zeros((8, E), jnp.float32)
              .at[0].set(conv_b.astype(jnp.float32))
              .at[1].set(ln_gamma.astype(jnp.float32))
              .at[2].set(ln_beta.astype(jnp.float32)))

    grid = (pl.cdiv(M, tile_m),)  # partial last block handled by masked output writes

    out = pl.pallas_call(
        _patch_embed_kernel,
        out_shape=jax.ShapeDtypeStruct((M, E), out_dtype),
        grid_spec=pltpu.PrefetchScalarGridSpec(
            num_scalar_prefetch=0,
            grid=grid,
            in_specs=[
                pl.BlockSpec((tile_m, K8), lambda i: (i, 0)),   # patch tile
                pl.BlockSpec((K8, E), lambda i: (0, 0)),        # projection weight
                pl.BlockSpec((8, E), lambda i: (0, 0)),         # packed bias/gamma/beta
            ],
            out_specs=pl.BlockSpec((tile_m, E), lambda i: (i, 0)),
        ),
        compiler_params=pltpu.CompilerParams(
            # Parallel M-tile axis -> v7x megacore splits the grid; neutral on
            # v5e/v6e.  VMEM limit is generation-aware (see _vmem_budget_bytes).
            dimension_semantics=("parallel",),
            vmem_limit_bytes=vmem_limit_bytes,
        ),
    )(patches, w_proj, params)

    return out.reshape(B, N, E)


def patch_embedding(x, conv_w, conv_b, ln_gamma, ln_beta, *,
                    patch_size, tile_m=None, out_dtype=jnp.float32):
    """x: (B, C, H, W).  conv_w: (E, C, p, p), conv_b/ln_gamma/ln_beta: (E,).
    Returns (B, N, E) with N = (H/p)*(W/p).  Pass out_dtype=jnp.bfloat16 to halve
    output HBM writeback (LN math stays f32 in-kernel either way)."""
    B, C, H, W = x.shape
    p = patch_size
    assert H % p == 0 and W % p == 0, "spatial dims must be divisible by patch_size"
    E = conv_w.shape[0]
    K = C * p * p
    K8 = 8 * pl.cdiv(K, 8)
    M = B * (H // p) * (W // p)

    vmem_limit = _vmem_budget_bytes()
    if tile_m is None:
        tile_m = _choose_tile_m(M, K8, E, jnp.dtype(out_dtype).itemsize, vmem_limit)

    return _patch_embedding_impl(
        x, conv_w, conv_b, ln_gamma, ln_beta,
        patch_size=patch_size, tile_m=int(tile_m),
        out_dtype=out_dtype, vmem_limit_bytes=vmem_limit)


if __name__ == "__main__":
    # Small config consistent with the module's forward:
    # img_size=32, patch_size=4, in_channel=3, embed_size=128, batch=4
    # -> N = 64 patches, M = B*N = 256, auto tile_m = 128 -> grid = (2,).
    B, C, H, W = 4, 3, 32, 32
    P = 4
    E = 128

    key = jax.random.PRNGKey(0)
    kx, kw, kb, kg, kbe = jax.random.split(key, 5)

    x = jax.random.normal(kx, (B, C, H, W), dtype=jnp.float32)
    conv_w = jax.random.normal(kw, (E, C, P, P), dtype=jnp.float32) * 0.02
    conv_b = jax.random.normal(kb, (E,), dtype=jnp.float32) * 0.01
    ln_gamma = 1.0 + 0.1 * jax.random.normal(kg, (E,), dtype=jnp.float32)
    ln_beta = 0.05 * jax.random.normal(kbe, (E,), dtype=jnp.float32)

    out = patch_embedding(x, conv_w, conv_b, ln_gamma, ln_beta, patch_size=P)
    jax.block_until_ready(out)

    # Pure-JAX f32 reference (conv-as-matmul + bias + LayerNorm).
    nH, nW = H // P, W // P
    N = nH * nW
    patches_ref = (
        x.reshape(B, C, nH, P, nW, P)
         .transpose(0, 2, 4, 1, 3, 5)
         .reshape(B, N, C * P * P)
    )
    y_ref = patches_ref @ conv_w.reshape(E, -1).T + conv_b
    mu = y_ref.mean(-1, keepdims=True)
    va = ((y_ref - mu) ** 2).mean(-1, keepdims=True)
    ref = (y_ref - mu) / jnp.sqrt(va + LN_EPS) * ln_gamma + ln_beta

    assert out.shape == (B, N, E)
    # bf16 GEMM operands (deliberate divergence from the PyTorch f32 conv) ->
    # relaxed tolerance vs the f32 reference.
    assert jnp.allclose(out, ref, atol=5e-2, rtol=5e-2), (
        float(jnp.max(jnp.abs(out - ref)))
    )
    print("KERNEL_OK")
</pallas_src>

<mosaic_0001>
module attributes {stable_mosaic.version = 11 : i64} {
  func.func @_patch_embed_kernel(%arg0: i32, %arg1: memref<128x48xbf16, #tpu.memory_space<vmem>>, %arg2: memref<48x128xbf16, #tpu.memory_space<vmem>>, %arg3: memref<8x128xf32, #tpu.memory_space<vmem>>, %arg4: memref<128x128xf32, #tpu.memory_space<vmem>>) attributes {dimension_semantics = [#tpu.dimension_semantics<parallel>], iteration_bounds = array<i64: 2>, scalar_prefetch = 0 : i64, scratch_operands = 0 : i64, tpu.core_type = #tpu.core_type<tc>, window_params = [{transform_indices = @transform_0, window_bounds = array<i64: 128, 48>}, {pipeline_mode = #tpu.pipeline_mode<synchronous>, transform_indices = @transform_1, window_bounds = array<i64: 48, 128>}, {pipeline_mode = #tpu.pipeline_mode<synchronous>, transform_indices = @transform_2, window_bounds = array<i64: 8, 128>}, {transform_indices = @transform_3, window_bounds = array<i64: 128, 128>}]} {
    %c0 = arith.constant 0 : index
    %c0_0 = arith.constant 0 : index
    %0 = vector.load %arg3[%c0, %c0_0] : memref<8x128xf32, #tpu.memory_space<vmem>>, vector<1x128xf32>
    %c1 = arith.constant 1 : index
    %c0_1 = arith.constant 0 : index
    %1 = vector.load %arg3[%c1, %c0_1] : memref<8x128xf32, #tpu.memory_space<vmem>>, vector<1x128xf32>
    %c2 = arith.constant 2 : index
    %c0_2 = arith.constant 0 : index
    %2 = vector.load %arg3[%c2, %c0_2] : memref<8x128xf32, #tpu.memory_space<vmem>>, vector<1x128xf32>
    %c0_3 = arith.constant 0 : index
    %c0_4 = arith.constant 0 : index
    %3 = vector.load %arg1[%c0_3, %c0_4] : memref<128x48xbf16, #tpu.memory_space<vmem>>, vector<128x48xbf16>
    %c0_5 = arith.constant 0 : index
    %c0_6 = arith.constant 0 : index
    %4 = vector.load %arg2[%c0_5, %c0_6] : memref<48x128xbf16, #tpu.memory_space<vmem>>, vector<48x128xbf16>
    %cst = arith.constant dense<0.000000e+00> : vector<128x128xf32>
    %5 = tpu.matmul %3, %4, %cst {dimension_numbers = #tpu.dot_dimension_numbers<[1], [0], [0], [1], [0, 0, 1, 1], [], []>} : vector<128x48xbf16>, vector<48x128xbf16>, vector<128x128xf32> -> vector<128x128xf32>
    %6 = vector.broadcast %0 : vector<1x128xf32> to vector<128x128xf32>
    %7 = arith.addf %5, %6 : vector<128x128xf32>
    %cst_7 = arith.constant dense<0.000000e+00> : vector<128xf32>
    %8 = vector.multi_reduction <add>, %7, %cst_7 [1] : vector<128x128xf32> to vector<128xf32>
    %9 = vector.shape_cast %8 : vector<128xf32> to vector<128x1xf32>
    %cst_8 = arith.constant 1.280000e+02 : f32
    %10 = vector.broadcast %cst_8 : f32 to vector<128x1xf32>
    %11 = arith.divf %9, %10 : vector<128x1xf32>
    %12 = vector.broadcast %11 : vector<128x1xf32> to vector<128x128xf32>
    %13 = arith.subf %7, %12 : vector<128x128xf32>
    %14 = arith.mulf %13, %13 : vector<128x128xf32>
    %cst_9 = arith.constant dense<0.000000e+00> : vector<128xf32>
    %15 = vector.multi_reduction <add>, %14, %cst_9 [1] : vector<128x128xf32> to vector<128xf32>
    %16 = vector.shape_cast %15 : vector<128xf32> to vector<128x1xf32>
    %cst_10 = arith.constant 1.280000e+02 : f32
    %17 = vector.broadcast %cst_10 : f32 to vector<128x1xf32>
    %18 = arith.divf %16, %17 : vector<128x1xf32>
    %cst_11 = arith.constant 9.99999974E-6 : f32
    %19 = vector.broadcast %cst_11 : f32 to vector<128x1xf32>
    %20 = arith.addf %18, %19 : vector<128x1xf32>
    %21 = math.rsqrt %20 : vector<128x1xf32>
    %22 = vector.broadcast %21 : vector<128x1xf32> to vector<128x128xf32>
    %23 = arith.mulf %13, %22 : vector<128x128xf32>
    %24 = vector.broadcast %1 : vector<1x128xf32> to vector<128x128xf32>
    %25 = arith.mulf %23, %24 : vector<128x128xf32>
    %26 = vector.broadcast %2 : vector<1x128xf32> to vector<128x128xf32>
    %27 = arith.addf %25, %26 : vector<128x128xf32>
    %c0_12 = arith.constant 0 : index
    %c0_13 = arith.constant 0 : index
    %28 = vector.load %arg4[%c0_12, %c0_13] : memref<128x128xf32, #tpu.memory_space<vmem>>, vector<128x128xf32>
    tpu.vector_store %arg4[%c0_12, %c0_13], %27 {strides = array<i32>} : memref<128x128xf32, #tpu.memory_space<vmem>>, vector<128x128xf32>,
    return
  }
  func.func @transform_0(%arg0: i32) -> (i32, i32) {
    %c0_i32 = arith.constant 0 : i32
    %c0_i32_0 = arith.constant 0 : i32
    return %arg0, %c0_i32 : i32, i32
  }
  func.func @transform_1(%arg0: i32) -> (i32, i32) {
    %c0_i32 = arith.constant 0 : i32
    %c0_i32_0 = arith.constant 0 : i32
    %c0_i32_1 = arith.constant 0 : i32
    return %c0_i32, %c0_i32_0 : i32, i32
  }
  func.func @transform_2(%arg0: i32) -> (i32, i32) {
    %c0_i32 = arith.constant 0 : i32
    %c0_i32_0 = arith.constant 0 : i32
    %c0_i32_1 = arith.constant 0 : i32
    return %c0_i32, %c0_i32_0 : i32, i32
  }
  func.func @transform_3(%arg0: i32) -> (i32, i32) {
    %c0_i32 = arith.constant 0 : i32
    %c0_i32_0 = arith.constant 0 : i32
    return %arg0, %c0_i32 : i32, i32
  }
}

</mosaic_0001>

<llo_original>
// kernel: _patch_embedding_impl.1
$region0: #{_patch_embedding_impl.1}
  #allocation0 [shape = 'u32[]', space=smem, size = 0x4, offset = 0x4, fixed_abs, tag = 'smem constant byte address 0x4 - core index']
  #allocation1 [shape = 'u32[144,128]{1,0:T(1,128)}', space=vmem, size = 0x12000, scoped, tag = 'internal scratch']
  %s0 = inlined_call_operand.vmem [shape: bf16[256,48], index: 0, kind: input, shape index: {}]
  %s1 = inlined_call_operand.vmem [shape: bf16[48,128], index: 1, kind: input, shape index: {}]
  %s2 = inlined_call_operand.vmem [shape: f32[8,128], index: 2, kind: input, shape index: {}]
  %s3 = inlined_call_operand.hbm [shape: f32[256,128], index: 3, kind: output, shape index: {}]
  %s4 = sld [smem:[#allocation0]]
  $region45: #{_patch_embedding_impl.1} parent=0
    _
  %s6 = ssub.s32 1, %s4
  %s7 = scalar_select 0, %s6, %s4
  $region1: #{_patch_embedding_impl.1} parent=0
    #allocation2 [shape = 'u8[131072]{0}', space=vmem, size = 0x20000, scoped, tag = 'output window, operand 0']
    #allocation3 [shape = 's32[2]{0}', space=sflag, size = 0x8, scoped, tag = 'scoped memory for _patch_embedding_impl.1']
    %8 = vsyncpa [#allocation3], 0
    %s9 = scalar_lea.sflag [#allocation3], 1
    %10 = vsyncpa %s9, 0
    loop: start=0, step=1, limit=4
    $region2: #{_patch_embedding_impl.1} parent=1 // loop_pre_header
      _
    $region3: #{_patch_embedding_impl.1} parent=1 // loop_header
      %s12 = sphi 0, %s16
      %p13 = scmp.ge.s32.totalorder %s12, 4
      %s22 = sphi 0, %s24
      %s25 = sphi 0, %s22
      %s26 = sphi 0, %s25
      %s42 = sphi 0, %s26
      %s46 = sphi 0, %s46
      %s48 = sphi 0, %s46
      %s49 = sphi 0, %s48
      %s63 = sphi 0, %s49
      %s67 = sphi 0, %s67
      %s69 = sphi 0, %s67
      %s70 = sphi 0, %s69
      %s84 = sphi 0, %s70
      %s90 = sphi 0, %s92
      %s93 = sphi 0, %s90
      %s94 = sphi 0, %s93
      %s110 = sphi 0, %s94
    $region4: #{_patch_embedding_impl.1} parent=1 // loop_header_branch
      %15 = sbr.rel (%p13) target = $region8
    $region5: #{_patch_embedding_impl.1} parent=1 // loop_body
      %s17 = ssub.s32 %s12, 1
      %s18 = ssub.s32 %s12, 2
      %s19 = sadd.s32 %s12, 1
      %s20 = ssub.s32 %s12, %s19
      %p21 = scmp.eq.s32.totalorder %s20, 0
      %s23 = sadd.s32 %s22, 1
      %s24 = scalar_select %p21, %s22, %s23
      %p27 = pneg %p21
      %p28 = scmp.eq.s32.totalorder %s12, 1
      %p29 = por %p27, %p28
      %p30 = scmp.ne.s32.totalorder %s22, %s25
      %p31 = scmp.eq.s32.totalorder %s12, 0
      %p32 = por %p30, %p31
      %p33 = scmp.ne.s32.totalorder %s22, %s25
      %p34 = scmp.eq.s32.totalorder %s17, 1
      %p35 = por %p33, %p34
      %p36 = scmp.ne.s32.totalorder %s25, %s26
      %p37 = scmp.eq.s32.totalorder %s17, 0
      %p38 = por %p36, %p37
      %p39 = scmp.ne.s32.totalorder %s25, %s26
      %p40 = scmp.eq.s32.totalorder %s18, 1
      %p41 = por %p39, %p40
      %p43 = scmp.ne.s32.totalorder %s26, %s42
      %p44 = scmp.eq.s32.totalorder %s18, 0
      %p45 = por %p43, %p44
      %s47 = sadd.s32 %s46, 1
      %p50 = scmp.eq.s32.totalorder %s12, 1
      %p51 = scmp.ne.s32.totalorder %s46, %s48
      %p52 = scmp.eq.s32.totalorder %s12, 0
      %p53 = por %p51, %p52
      %p54 = scmp.ne.s32.totalorder %s46, %s48
      %p55 = scmp.eq.s32.totalorder %s17, 1
      %p56 = por %p54, %p55
      %p57 = scmp.ne.s32.totalorder %s48, %s49
      %p58 = scmp.eq.s32.totalorder %s17, 0
      %p59 = por %p57, %p58
      %p60 = scmp.ne.s32.totalorder %s48, %s49
      %p61 = scmp.eq.s32.totalorder %s18, 1
      %p62 = por %p60, %p61
      %p64 = scmp.ne.s32.totalorder %s49, %s63
      %p65 = scmp.eq.s32.totalorder %s18, 0
      %p66 = por %p64, %p65
      %s68 = sadd.s32 %s67, 1
      %p71 = scmp.eq.s32.totalorder %s12, 1
      %p72 = scmp.ne.s32.totalorder %s67, %s69
      %p73 = scmp.eq.s32.totalorder %s12, 0
      %p74 = por %p72, %p73
      %p75 = scmp.ne.s32.totalorder %s67, %s69
      %p76 = scmp.eq.s32.totalorder %s17, 1
      %p77 = por %p75, %p76
      %p78 = scmp.ne.s32.totalorder %s69, %s70
      %p79 = scmp.eq.s32.totalorder %s17, 0
      %p80 = por %p78, %p79
      %p81 = scmp.ne.s32.totalorder %s69, %s70
      %p82 = scmp.eq.s32.totalorder %s18, 1
      %p83 = por %p81, %p82
      %p85 = scmp.ne.s32.totalorder %s70, %s84
      %p86 = scmp.eq.s32.totalorder %s18, 0
      %p87 = por %p85, %p86
      %s88 = ssub.s32 %s12, %s19
      %p89 = scmp.eq.s32.totalorder %s88, 0
      %s91 = sadd.s32 %s90, 1
      %s92 = scalar_select %p89, %s90, %s91
      %p95 = pneg %p89
      %p96 = scmp.eq.s32.totalorder %s12, 1
      %p97 = por %p95, %p96
      %p98 = scmp.ne.s32.totalorder %s90, %s93
      %p99 = scmp.eq.s32.totalorder %s12, 0
      %p100 = por %p98, %p99
      %p101 = scmp.ne.s32.totalorder %s90, %s93
      %p102 = scmp.eq.s32.totalorder %s17, 1
      %p103 = por %p101, %p102
      %p104 = scmp.ne.s32.totalorder %s93, %s94
      %p105 = scmp.eq.s32.totalorder %s17, 0
      %p106 = por %p104, %p105
      %p107 = scmp.ne.s32.totalorder %s93, %s94
      %p108 = scmp.eq.s32.totalorder %s18, 1
      %p109 = por %p107, %p108
      %p111 = scmp.ne.s32.totalorder %s94, %s110
      %p112 = scmp.eq.s32.totalorder %s18, 0
      %p113 = por %p111, %p112
      %p114 = scmp.le.s32.totalorder 1, %s12
      %p115 = scmp.lt.s32.totalorder %s12, 3
      %p116 = pnand %p114, %p115
      %p117 = pneg %p116
      // Predicated region
      $region9: #{_patch_embedding_impl.1} parent=5 // pred_check
        _
      $region10: #{_patch_embedding_impl.1} parent=5 // pred_check_branch
        %119 = sbr.rel (%p116) target = $region12
      $region11: #{_patch_embedding_impl.1} parent=5 // pred_region
        %s120 = ssub.s32 %s12, 1
        // Predicated region
        $region13: #{_patch_embedding_impl.1} parent=11 // pred_check
          %p121 = pneg %p59
        $region14: #{_patch_embedding_impl.1} parent=11 // pred_check_branch
          %123 = sbr.rel (%p121) target = $region16
        $region15: #{_patch_embedding_impl.1} parent=11 // pred_region
          _
        $region16: #{_patch_embedding_impl.1} parent=11 // pred_fallthru
          _
        // Predicated region
        $region17: #{_patch_embedding_impl.1} parent=11 // pred_check
          %p124 = pneg %p80
        $region18: #{_patch_embedding_impl.1} parent=11 // pred_check_branch
          %126 = sbr.rel (%p124) target = $region20
        $region19: #{_patch_embedding_impl.1} parent=11 // pred_region
          _
        $region20: #{_patch_embedding_impl.1} parent=11 // pred_fallthru
          _
      $region12: #{_patch_embedding_impl.1} parent=5 // pred_fallthru
        _
      %p127 = scmp.lt.s32.totalorder %s12, 2
      // Predicated region
      $region21: #{_patch_embedding_impl.1} parent=5 // pred_check
        %p128 = pneg %p127
      $region22: #{_patch_embedding_impl.1} parent=5 // pred_check_branch
        %130 = sbr.rel (%p128) target = $region24
      $region23: #{_patch_embedding_impl.1} parent=5 // pred_region
        // Predicated region
        $region25: #{_patch_embedding_impl.1} parent=23 // pred_check
          %p131 = pneg %p32
        $region26: #{_patch_embedding_impl.1} parent=23 // pred_check_branch
          %133 = sbr.rel (%p131) target = $region28
        $region27: #{_patch_embedding_impl.1} parent=23 // pred_region
          %s134 = smul.u32 16, %s12
          %p135 = scmp.lt.s32.totalorder %s134, 31
          %s136 = scalar_select %p135, %s134, 31
          %s137 = smul.addr %s136, 4
          %s138 = scalar_lea.vmem %s0, %s137
          %s139 = smul.u32 16, %s12
        $region28: #{_patch_embedding_impl.1} parent=23 // pred_fallthru
          _
      $region24: #{_patch_embedding_impl.1} parent=5 // pred_fallthru
        _
      %p140 = scmp.le.s32.totalorder 1, %s12
      %p141 = scmp.lt.s32.totalorder %s12, 3
      %p142 = pnand %p140, %p141
      %p143 = pneg %p142
      // Predicated region
      $region29: #{_patch_embedding_impl.1} parent=5 // pred_check
        _
      $region30: #{_patch_embedding_impl.1} parent=5 // pred_check_branch
        %145 = sbr.rel (%p142) target = $region32
      $region31: #{_patch_embedding_impl.1} parent=5 // pred_region
        %s146 = ssub.s32 %s12, 1
        %s147 = smul.u32 16, %s17
        %p148 = scmp.lt.s32.totalorder %s147, 31
        %s149 = scalar_select %p148, %s147, 31
        %s150 = smul.addr %s149, 4
        %s151 = scalar_lea.vmem %s0, %s150
        %p152 = pneg %p38
        %p153 = pneg %p35
        %p154 = pneg %p59
        %p155 = pneg %p56
        %p156 = pneg %p80
        %p157 = pneg %p77
        %p158 = pneg %p106
        %p159 = pneg %p103
        %s160 = sand.u32 %s93, 1
        %s161 = scalar_lea.sflag [#allocation3], %s160
        %s162 = sand.u32 %s93, 1
        %s163 = smul.addr %s162, 128
        %s164 = scalar_lea.vmem [#allocation2], %s163
        %s165 = smul.u32 16, %s17
        %p166 = scmp.lt.s32.totalorder %s165, 31
        %s167 = scalar_select %p166, %s165, 31
        %s168 = smul.addr %s167, 4
        %s169 = scalar_lea.vmem %s0, %s168
        %s170 = smul.u32 16, %s17
        %s171 = smul.u32 16, %s17
        %v173 = vld [vmem:[%s2] sm:$0x1]
        %v174 = vld [vmem:[%s2 + $0x1] sm:$0x1]
        %v175 = vld [vmem:[%s2 + $0x2] sm:$0x1]
        %v176 = vld [vmem:[%s169] sm:$0xf]
        %v177 = vld [vmem:[%s169 + $0x4] sm:$0xf]
        %v178 = vld [vmem:[%s169 + $0x8] sm:$0xf]
        %v179 = vld [vmem:[%s169 + $0xc] sm:$0xf]
        %v180 = vld [vmem:[%s169 + $0x10] sm:$0xf]
        %v181 = vld [vmem:[%s169 + $0x14] sm:$0xf]
        %v182 = vld [vmem:[%s169 + $0x18] sm:$0xf]
        %v183 = vld [vmem:[%s169 + $0x1c] sm:$0xf]
        %v184 = vld [vmem:[%s169 + $0x20] sm:$0xf]
        %v185 = vld [vmem:[%s169 + $0x24] sm:$0xf]
        %v186 = vld [vmem:[%s169 + $0x28] sm:$0xf]
        %v187 = vld [vmem:[%s169 + $0x2c] sm:$0xf]
        %v188 = vld [vmem:[%s169 + $0x30] sm:$0xf]
        %v189 = vld [vmem:[%s169 + $0x34] sm:$0xf]
        %v190 = vld [vmem:[%s169 + $0x38] sm:$0xf]
        %v191 = vld [vmem:[%s169 + $0x3c] sm:$0xf]
        %v192 = vld [vmem:[%s1] sm:$0xf]
        %v193 = vld [vmem:[%s1 + $0x4] sm:$0xf]
        %v194 = vld [vmem:[%s1 + $0x8] sm:$0xf]
        %v195 = vld [vmem:[%s1 + $0xc] sm:$0xf]
        %v196 = vld [vmem:[%s1 + $0x10] sm:$0xf]
        %v197 = vld [vmem:[%s1 + $0x14] sm:$0xf]
        %v198 = vlaneseq
        %v199 = vshrl.u32 %v198, 7
        %v200 = vsub.s32 0, %v199
        %v201 = vrot.slane %v173, %v200
        %v218 = vunpack.c.l.b16 %v176
        %v219 = vunpack.c.l.b16 %v177
        %v220 = vunpack.c.l.b16 %v178
        %v221 = vunpack.c.l.b16 %v179
        %v222 = vunpack.c.l.b16 %v180
        %v223 = vunpack.c.l.b16 %v181
        %v224 = vunpack.c.l.b16 %v182
        %v225 = vunpack.c.l.b16 %v183
        %v226 = vunpack.c.l.b16 %v184
        %v227 = vunpack.c.l.b16 %v185
        %v228 = vunpack.c.l.b16 %v186
        %v229 = vunpack.c.l.b16 %v187
        %v230 = vunpack.c.l.b16 %v188
        %v231 = vunpack.c.l.b16 %v189
        %v232 = vunpack.c.l.b16 %v190
        %v233 = vunpack.c.l.b16 %v191
        %v234 = vpack.c.b16 %v219, %v218
        %v235 = vpack.c.b16 %v221, %v220
        %v236 = vpack.c.b16 %v223, %v222
        %v237 = vpack.c.b16 %v225, %v224
        %v238 = vpack.c.b16 %v227, %v226
        %v239 = vpack.c.b16 %v229, %v228
        %v240 = vpack.c.b16 %v231, %v230
        %v241 = vpack.c.b16 %v233, %v232
        %v248 = vunpack.c.l.b16 %v192
        %v249 = vunpack.c.l.b16 %v193
        %v250 = vunpack.c.l.b16 %v194
        %v251 = vunpack.c.l.b16 %v195
        %v252 = vunpack.c.l.b16 %v196
        %v253 = vunpack.c.l.b16 %v197
        %v254 = vpack.c.b16 %v249, %v248
        %v255 = vpack.c.b16 %v251, %v250
        %v256 = vpack.c.b16 %v253, %v252
        %vm260 = vcmask 392192
        %v262 = vsel %vm260, %v234, 0
        %v265 = vsel %vm260, %v235, 0
        %v268 = vsel %vm260, %v236, 0
        %v271 = vsel %vm260, %v237, 0
        %v274 = vsel %vm260, %v238, 0
        %v277 = vsel %vm260, %v239, 0
        %v280 = vsel %vm260, %v240, 0
        %v283 = vsel %vm260, %v241, 0
        %285 = vmatprep.subr.bf16.mxu0 0
        %286 = vmatpush1.bf16.msra.mxu0 %v254
        %287 = vmatprep.subr.bf16.mxu0 0
        %288 = vmatpush1.bf16.msra.mxu0 %v255
        %289 = vmatprep.subr.bf16.mxu0 0
        %290 = vmatpush1.bf16.msra.mxu0 %v256
        %291 = vmatprep.subr.bf16.mxu0 0
        %292 = vmatpush1.bf16.msra.mxu0 0
        %293 = vmatprep.subr.bf16.mxu0 0
        %294 = vmatpush1.bf16.msra.mxu0 0
        %295 = vmatprep.subr.bf16.mxu0 0
        %296 = vmatpush1.bf16.msra.mxu0 0
        %297 = vmatprep.subr.bf16.mxu0 0
        %298 = vmatpush1.bf16.msra.mxu0 0
        %299 = vmatprep.subr.bf16.mxu0 0
        %300 = vmatpush1.bf16.msra.mxu0 0
        %301 = vmatprep.subr.bf16.mxu0 0
        %302 = vmatpush1.bf16.msra.mxu0 0
        %303 = vmatprep.subr.bf16.mxu0 0
        %304 = vmatpush1.bf16.msra.mxu0 0
        %305 = vmatprep.subr.bf16.mxu0 0
        %306 = vmatpush1.bf16.msra.mxu0 0
        %307 = vmatprep.subr.bf16.mxu0 0
        %308 = vmatpush1.bf16.msra.mxu0 0
        %309 = vmatprep.subr.bf16.mxu0 0
        %310 = vmatpush1.bf16.msra.mxu0 0
        %311 = vmatprep.subr.bf16.mxu0 0
        %312 = vmatpush1.bf16.msra.mxu0 0
        %313 = vmatprep.subr.bf16.mxu0 0
        %314 = vmatpush1.bf16.msra.mxu0 0
        %315 = vmatprep.subr.bf16.mxu0 0
        %316 = vmatpush1.bf16.msra.mxu0 0
        %317 = vmatprep.mubr.bf16.mxu0 0
        %318 = vmatmul.mubr.bf16.gmra.mrb[0].mxu0 %v262
        %v319 = vpop.f32.mrb[0].mxu0
        %v320 = vadd.f32 %v201, %v319
        %v321 = vpop.f32.mrb[0].mxu0
        %v322 = vpop.f32.mrb[0].mxu0
        %v323 = vadd.f32 %v201, %v322
        %v324 = vpop.f32.mrb[0].mxu0
        %325 = vmatprep.mubr.bf16.mxu0 0
        %326 = vmatmul.mubr.bf16.gmra.mrb[0].mxu0 %v265
        %v327 = vpop.f32.mrb[0].mxu0
        %v328 = vadd.f32 %v201, %v327
        %v329 = vpop.f32.mrb[0].mxu0
        %v330 = vpop.f32.mrb[0].mxu0
        %v331 = vadd.f32 %v201, %v330
        %v332 = vpop.f32.mrb[0].mxu0
        %333 = vmatprep.mubr.bf16.mxu0 0
        %334 = vmatmul.mubr.bf16.gmra.mrb[0].mxu0 %v268
        %v335 = vpop.f32.mrb[0].mxu0
        %v336 = vadd.f32 %v201, %v335
        %v337 = vpop.f32.mrb[0].mxu0
        %v338 = vpop.f32.mrb[0].mxu0
        %v339 = vadd.f32 %v201, %v338
        %v340 = vpop.f32.mrb[0].mxu0
        %341 = vmatprep.mubr.bf16.mxu0 0
        %342 = vmatmul.mubr.bf16.gmra.mrb[0].mxu0 %v271
        %v343 = vpop.f32.mrb[0].mxu0
        %v344 = vadd.f32 %v201, %v343
        %v345 = vpop.f32.mrb[0].mxu0
        %v346 = vpop.f32.mrb[0].mxu0
        %v347 = vadd.f32 %v201, %v346
        %v348 = vpop.f32.mrb[0].mxu0
        %349 = vmatprep.mubr.bf16.mxu0 0
        %350 = vmatmul.mubr.bf16.gmra.mrb[0].mxu0 %v274
        %v351 = vpop.f32.mrb[0].mxu0
        %v352 = vadd.f32 %v201, %v351
        %v353 = vpop.f32.mrb[0].mxu0
        %v354 = vpop.f32.mrb[0].mxu0
        %v355 = vadd.f32 %v201, %v354
        %v356 = vpop.f32.mrb[0].mxu0
        %357 = vmatprep.mubr.bf16.mxu0 0
        %358 = vmatmul.mubr.bf16.gmra.mrb[0].mxu0 %v277
        %v359 = vpop.f32.mrb[0].mxu0
        %v360 = vadd.f32 %v201, %v359
        %v361 = vpop.f32.mrb[0].mxu0
        %v362 = vpop.f32.mrb[0].mxu0
        %v363 = vadd.f32 %v201, %v362
        %v364 = vpop.f32.mrb[0].mxu0
        %365 = vmatprep.mubr.bf16.mxu0 0
        %366 = vmatmul.mubr.bf16.gmra.mrb[0].mxu0 %v280
        %v367 = vpop.f32.mrb[0].mxu0
        %v368 = vadd.f32 %v201, %v367
        %v369 = vpop.f32.mrb[0].mxu0
        %v370 = vpop.f32.mrb[0].mxu0
        %v371 = vadd.f32 %v201, %v370
        %v372 = vpop.f32.mrb[0].mxu0
        %373 = vmatprep.mubr.bf16.mxu0 0
        %374 = vmatmul.mubr.bf16.gmra.mrb[0].mxu0 %v283
        %v375 = vpop.f32.mrb[0].mxu0
        %v376 = vadd.f32 %v201, %v375
        %v377 = vpop.f32.mrb[0].mxu0
        %v378 = vpop.f32.mrb[0].mxu0
        %v379 = vadd.f32 %v201, %v378
        %v380 = vpop.f32.mrb[0].mxu0
        %381 = vdwg.mxu0
        %382 = vadd.xlane.f32.xlu0 %v320
        %v383 = vpop.xlane.xlu0 %382
        %384 = vadd.xlane.f32.xlu0 %v323
        %v385 = vpop.xlane.xlu0 %384
        %386 = vadd.xlane.f32.xlu0 %v328
        %v387 = vpop.xlane.xlu0 %386
        %388 = vadd.xlane.f32.xlu0 %v331
        %v389 = vpop.xlane.xlu0 %388
        %390 = vadd.xlane.f32.xlu0 %v336
        %v391 = vpop.xlane.xlu0 %390
        %392 = vadd.xlane.f32.xlu0 %v339
        %v393 = vpop.xlane.xlu0 %392
        %394 = vadd.xlane.f32.xlu0 %v344
        %v395 = vpop.xlane.xlu0 %394
        %396 = vadd.xlane.f32.xlu0 %v347
        %v397 = vpop.xlane.xlu0 %396
        %398 = vadd.xlane.f32.xlu0 %v352
        %v399 = vpop.xlane.xlu0 %398
        %400 = vadd.xlane.f32.xlu0 %v355
        %v401 = vpop.xlane.xlu0 %400
        %402 = vadd.xlane.f32.xlu0 %v360
        %v403 = vpop.xlane.xlu0 %402
        %404 = vadd.xlane.f32.xlu0 %v363
        %v405 = vpop.xlane.xlu0 %404
        %406 = vadd.xlane.f32.xlu0 %v368
        %v407 = vpop.xlane.xlu0 %406
        %408 = vadd.xlane.f32.xlu0 %v371
        %v409 = vpop.xlane.xlu0 %408
        %410 = vadd.xlane.f32.xlu0 %v376
        %v411 = vpop.xlane.xlu0 %410
        %412 = vadd.xlane.f32.xlu0 %v379
        %v413 = vpop.xlane.xlu0 %412
        %v414 = vrcp.pop 128.0
        %v415 = vmul.f32 %v383, %v414
        %v416 = vmul.f32 %v385, %v414
        %v417 = vmul.f32 %v387, %v414
        %v418 = vmul.f32 %v389, %v414
        %v419 = vmul.f32 %v391, %v414
        %v420 = vmul.f32 %v393, %v414
        %v421 = vmul.f32 %v395, %v414
        %v422 = vmul.f32 %v397, %v414
        %v423 = vmul.f32 %v399, %v414
        %v424 = vmul.f32 %v401, %v414
        %v425 = vmul.f32 %v403, %v414
        %v426 = vmul.f32 %v405, %v414
        %v427 = vmul.f32 %v407, %v414
        %v428 = vmul.f32 %v409, %v414
        %v429 = vmul.f32 %v411, %v414
        %v430 = vmul.f32 %v413, %v414
        %v431 = vsub.f32 %v320, %v415
        %v432 = vsub.f32 %v323, %v416
        %v433 = vsub.f32 %v328, %v417
        %v434 = vsub.f32 %v331, %v418
        %v435 = vsub.f32 %v336, %v419
        %v436 = vsub.f32 %v339, %v420
        %v437 = vsub.f32 %v344, %v421
        %v438 = vsub.f32 %v347, %v422
        %v439 = vsub.f32 %v352, %v423
        %v440 = vsub.f32 %v355, %v424
        %v441 = vsub.f32 %v360, %v425
        %v442 = vsub.f32 %v363, %v426
        %v443 = vsub.f32 %v368, %v427
        %v444 = vsub.f32 %v371, %v428
        %v445 = vsub.f32 %v376, %v429
        %v446 = vsub.f32 %v379, %v430
        %v447 = vmul.f32 %v431, %v431
        %v448 = vmul.f32 %v432, %v432
        %v449 = vmul.f32 %v433, %v433
        %v450 = vmul.f32 %v434, %v434
        %v451 = vmul.f32 %v435, %v435
        %v452 = vmul.f32 %v436, %v436
        %v453 = vmul.f32 %v437, %v437
        %v454 = vmul.f32 %v438, %v438
        %v455 = vmul.f32 %v439, %v439
        %v456 = vmul.f32 %v440, %v440
        %v457 = vmul.f32 %v441, %v441
        %v458 = vmul.f32 %v442, %v442
        %v459 = vmul.f32 %v443, %v443
        %v460 = vmul.f32 %v444, %v444
        %v461 = vmul.f32 %v445, %v445
        %v462 = vmul.f32 %v446, %v446
        %463 = vadd.xlane.f32.xlu0 %v447
        %v464 = vpop.xlane.xlu0 %463
        %465 = vadd.xlane.f32.xlu0 %v448
        %v466 = vpop.xlane.xlu0 %465
        %467 = vadd.xlane.f32.xlu0 %v449
        %v468 = vpop.xlane.xlu0 %467
        %469 = vadd.xlane.f32.xlu0 %v450
        %v470 = vpop.xlane.xlu0 %469
        %471 = vadd.xlane.f32.xlu0 %v451
        %v472 = vpop.xlane.xlu0 %471
        %473 = vadd.xlane.f32.xlu0 %v452
        %v474 = vpop.xlane.xlu0 %473
        %475 = vadd.xlane.f32.xlu0 %v453
        %v476 = vpop.xlane.xlu0 %475
        %477 = vadd.xlane.f32.xlu0 %v454
        %v478 = vpop.xlane.xlu0 %477
        %479 = vadd.xlane.f32.xlu0 %v455
        %v480 = vpop.xlane.xlu0 %479
        %481 = vadd.xlane.f32.xlu0 %v456
        %v482 = vpop.xlane.xlu0 %481
        %483 = vadd.xlane.f32.xlu0 %v457
        %v484 = vpop.xlane.xlu0 %483
        %485 = vadd.xlane.f32.xlu0 %v458
        %v486 = vpop.xlane.xlu0 %485
        %487 = vadd.xlane.f32.xlu0 %v459
        %v488 = vpop.xlane.xlu0 %487
        %489 = vadd.xlane.f32.xlu0 %v460
        %v490 = vpop.xlane.xlu0 %489
        %491 = vadd.xlane.f32.xlu0 %v461
        %v492 = vpop.xlane.xlu0 %491
        %493 = vadd.xlane.f32.xlu0 %v462
        %v494 = vpop.xlane.xlu0 %493
        %v495 = vmul.f32 %v464, %v414
        %v496 = vmul.f32 %v466, %v414
        %v497 = vmul.f32 %v468, %v414
        %v498 = vmul.f32 %v470, %v414
        %v499 = vmul.f32 %v472, %v414
        %v500 = vmul.f32 %v474, %v414
        %v501 = vmul.f32 %v476, %v414
        %v502 = vmul.f32 %v478, %v414
        %v503 = vmul.f32 %v480, %v414
        %v504 = vmul.f32 %v482, %v414
        %v505 = vmul.f32 %v484, %v414
        %v506 = vmul.f32 %v486, %v414
        %v507 = vmul.f32 %v488, %v414
        %v508 = vmul.f32 %v490, %v414
        %v509 = vmul.f32 %v492, %v414
        %v510 = vmul.f32 %v494, %v414
        %v511 = vadd.f32 %v495, 1e-05
        %v512 = vadd.f32 %v496, 1e-05
        %v513 = vadd.f32 %v497, 1e-05
        %v514 = vadd.f32 %v498, 1e-05
        %v515 = vadd.f32 %v499, 1e-05
        %v516 = vadd.f32 %v500, 1e-05
        %v517 = vadd.f32 %v501, 1e-05
        %v518 = vadd.f32 %v502, 1e-05
        %v519 = vadd.f32 %v503, 1e-05
        %v520 = vadd.f32 %v504, 1e-05
        %v521 = vadd.f32 %v505, 1e-05
        %v522 = vadd.f32 %v506, 1e-05
        %v523 = vadd.f32 %v507, 1e-05
        %v524 = vadd.f32 %v508, 1e-05
        %v525 = vadd.f32 %v509, 1e-05
        %v526 = vadd.f32 %v510, 1e-05
        %v527 = vrsqrt.pop %v511
        %v528 = vrsqrt.pop %v512
        %v529 = vrsqrt.pop %v513
        %v530 = vrsqrt.pop %v514
        %v531 = vrsqrt.pop %v515
        %v532 = vrsqrt.pop %v516
        %v533 = vrsqrt.pop %v517
        %v534 = vrsqrt.pop %v518
        %v535 = vrsqrt.pop %v519
        %v536 = vrsqrt.pop %v520
        %v537 = vrsqrt.pop %v521
        %v538 = vrsqrt.pop %v522
        %v539 = vrsqrt.pop %v523
        %v540 = vrsqrt.pop %v524
        %v541 = vrsqrt.pop %v525
        %v542 = vrsqrt.pop %v526
        %v543 = vmul.f32 %v431, %v527
        %v544 = vmul.f32 %v432, %v528
        %v545 = vmul.f32 %v433, %v529
        %v546 = vmul.f32 %v434, %v530
        %v547 = vmul.f32 %v435, %v531
        %v548 = vmul.f32 %v436, %v532
        %v549 = vmul.f32 %v437, %v533
        %v550 = vmul.f32 %v438, %v534
        %v551 = vmul.f32 %v439, %v535
        %v552 = vmul.f32 %v440, %v536
        %v553 = vmul.f32 %v441, %v537
        %v554 = vmul.f32 %v442, %v538
        %v555 = vmul.f32 %v443, %v539
        %v556 = vmul.f32 %v444, %v540
        %v557 = vmul.f32 %v445, %v541
        %v558 = vmul.f32 %v446, %v542
        %v559 = vlaneseq
        %v560 = vshrl.u32 %v559, 7
        %v561 = vsub.s32 0, %v560
        %v562 = vrot.slane %v174, %v561
        %v563 = vmul.f32 %v543, %v562
        %v564 = vmul.f32 %v544, %v562
        %v565 = vmul.f32 %v545, %v562
        %v566 = vmul.f32 %v546, %v562
        %v567 = vmul.f32 %v547, %v562
        %v568 = vmul.f32 %v548, %v562
        %v569 = vmul.f32 %v549, %v562
        %v570 = vmul.f32 %v550, %v562
        %v571 = vmul.f32 %v551, %v562
        %v572 = vmul.f32 %v552, %v562
        %v573 = vmul.f32 %v553, %v562
        %v574 = vmul.f32 %v554, %v562
        %v575 = vmul.f32 %v555, %v562
        %v576 = vmul.f32 %v556, %v562
        %v577 = vmul.f32 %v557, %v562
        %v578 = vmul.f32 %v558, %v562
        %v579 = vlaneseq
        %v580 = vshrl.u32 %v579, 7
        %v581 = vsub.s32 0, %v580
        %v582 = vrot.slane %v175, %v581
        %v583 = vadd.f32 %v563, %v582
        %v584 = vadd.f32 %v564, %v582
        %v585 = vadd.f32 %v565, %v582
        %v586 = vadd.f32 %v566, %v582
        %v587 = vadd.f32 %v567, %v582
        %v588 = vadd.f32 %v568, %v582
        %v589 = vadd.f32 %v569, %v582
        %v590 = vadd.f32 %v570, %v582
        %v591 = vadd.f32 %v571, %v582
        %v592 = vadd.f32 %v572, %v582
        %v593 = vadd.f32 %v573, %v582
        %v594 = vadd.f32 %v574, %v582
        %v595 = vadd.f32 %v575, %v582
        %v596 = vadd.f32 %v576, %v582
        %v597 = vadd.f32 %v577, %v582
        %v598 = vadd.f32 %v578, %v582
        %599 = vst [vmem:[%s164] sm:$0xff] %v583
        %600 = vst [vmem:[%s164 + $0x8] sm:$0xff] %v584
        %601 = vst [vmem:[%s164 + $0x10] sm:$0xff] %v585
        %602 = vst [vmem:[%s164 + $0x18] sm:$0xff] %v586
        %603 = vst [vmem:[%s164 + $0x20] sm:$0xff] %v587
        %604 = vst [vmem:[%s164 + $0x28] sm:$0xff] %v588
        %605 = vst [vmem:[%s164 + $0x30] sm:$0xff] %v589
        %606 = vst [vmem:[%s164 + $0x38] sm:$0xff] %v590
        %607 = vst [vmem:[%s164 + $0x40] sm:$0xff] %v591
        %608 = vst [vmem:[%s164 + $0x48] sm:$0xff] %v592
        %609 = vst [vmem:[%s164 + $0x50] sm:$0xff] %v593
        %610 = vst [vmem:[%s164 + $0x58] sm:$0xff] %v594
        %611 = vst [vmem:[%s164 + $0x60] sm:$0xff] %v595
        %612 = vst [vmem:[%s164 + $0x68] sm:$0xff] %v596
        %613 = vst [vmem:[%s164 + $0x70] sm:$0xff] %v597
        %614 = vst [vmem:[%s164 + $0x78] sm:$0xff] %v598
        %s615 = sand.u32 %s93, 1
        %s616 = scalar_lea.sflag [#allocation3], %s615
        %s617 = sand.u32 %s93, 1
        %s618 = smul.addr %s617, 128
        %s619 = scalar_lea.vmem [#allocation2], %s618
        // Predicated region
        $region33: #{_patch_embedding_impl.1} parent=31 // pred_check
          %p620 = pneg %p103
        $region34: #{_patch_embedding_impl.1} parent=31 // pred_check_branch
          %622 = sbr.rel (%p620) target = $region36
        $region35: #{_patch_embedding_impl.1} parent=31 // pred_region
          %s623 = smul.u32 16, %s17
          %s625 = ssub.s32 2048, 2048
          %626 = vsyncadd %s616, %s625
          %s627 = smul.addr %s623, 128
          %s628 = scalar_lea.hbm %s3, %s627
          %s629 = sshll.u32 %s619, 4
          %s630 = int_to_ptr.vmem [resolvable:$true] %s629
          %635 = dma.vmem_to_hbm [thread:$0]  %s630, 2048, %s628, %s616, 128, 128, 8
        $region36: #{_patch_embedding_impl.1} parent=31 // pred_fallthru
          _
      $region32: #{_patch_embedding_impl.1} parent=5 // pred_fallthru
        _
      %p636 = scmp.le.s32.totalorder 2, %s12
      // Predicated region
      $region37: #{_patch_embedding_impl.1} parent=5 // pred_check
        %p637 = pneg %p636
      $region38: #{_patch_embedding_impl.1} parent=5 // pred_check_branch
        %639 = sbr.rel (%p637) target = $region40
      $region39: #{_patch_embedding_impl.1} parent=5 // pred_region
        %s640 = ssub.s32 %s12, 2
        // Predicated region
        $region41: #{_patch_embedding_impl.1} parent=39 // pred_check
          %p641 = pneg %p109
        $region42: #{_patch_embedding_impl.1} parent=39 // pred_check_branch
          %643 = sbr.rel (%p641) target = $region44
        $region43: #{_patch_embedding_impl.1} parent=39 // pred_region
          %s644 = sand.u32 %s94, 1
          %s645 = scalar_lea.sflag [#allocation3], %s644
          %s646 = sand.u32 %s94, 1
          %s647 = smul.addr %s646, 128
          %s648 = scalar_lea.vmem [#allocation2], %s647
          %649 = dma.done %s645, 2048
        $region44: #{_patch_embedding_impl.1} parent=39 // pred_fallthru
          _
      $region40: #{_patch_embedding_impl.1} parent=5 // pred_fallthru
        _
    $region6: #{_patch_embedding_impl.1} parent=1 // loop_footer
      %s16 = sadd.s32 1, %s12
    $region7: #{_patch_embedding_impl.1} parent=1 // loop_footer_branch
      %11 = sbr.rel target = $region3
    $region8: #{_patch_embedding_impl.1} parent=1 // loop_exit
      _
    %650 = vsyncpa [#allocation3], 1
    %s651 = scalar_lea.sflag [#allocation3], 1
    %652 = vsyncpa %s651, 1

</llo_original>
